<compile_context>
chip_gen: v7x
topology: tpu7x:2x2x1
jax: 0.10.0
libtpu: 0.0.40
codegen_flags: <defaults>
</compile_context>

<pallas_src>
import functools
import math

import jax
import jax.numpy as jnp
from jax.experimental import pallas as pl
from jax.experimental.pallas import tpu as pltpu


IN_FEATURES = 128    # channels implied by view(-1, 128) / nn.Linear(128, 14)
OUT_FEATURES = 14


# ------------------------------ Pallas kernel ------------------------------ #

def _pool_fc_kernel(x_ref, w_ref, b_ref, o_ref):
    """Fused AdaptiveAvgPool1d(1) + view(-1, C) + Linear(C, OUT) for one batch tile.

    x_ref: (TN, L, C)  activations, NLC layout (C=128 on lanes, L on sublanes)
    w_ref: (C, OUT)    fc weight, pre-transposed for `pooled @ W`
    b_ref: (1, OUT)    fc bias
    o_ref: (TN, OUT)   logits
    """
    L = x_ref.shape[1]
    # Global average pool == sum over the sublane (L) axis; accumulate in f32.
    pooled = jnp.sum(x_ref[...].astype(jnp.float32), axis=1)          # (TN, C)
    # FC head: one MXU matmul (M=TN, K=C=128, N=OUT).
    y = jnp.dot(pooled, w_ref[...].astype(jnp.float32),
                preferred_element_type=jnp.float32)                   # (TN, OUT)
    # Fold the 1/L pool scale into the small (TN, OUT) result, add bias on VPU.
    o_ref[...] = (y * (1.0 / L) + b_ref[...]).astype(o_ref.dtype)


# -------------------------------- wrapper ---------------------------------- #

def pool_fc_forward(params, x_ncl, *, tile_n=512):
    """x_ncl: (N, 128, L) activations (PyTorch NCL convention) -> logits (N, 14)."""
    N, C, L = x_ncl.shape
    assert C == IN_FEATURES, f"expected {IN_FEATURES} channels, got {C}"
    assert tile_n % 8 == 0

    # Lane-dense layout: channel axis (128) onto the 128-lane axis.
    # (A producer emitting NLC directly would skip this transpose.)
    x_nlc = jnp.transpose(x_ncl, (0, 2, 1))                 # (N, L, C)

    w = params["fc_w"]                                      # (C, OUT)
    b = params["fc_b"].reshape(1, OUT_FEATURES)             # (1, OUT)

    tn = N if N <= tile_n else tile_n                       # batch-row tile
    grid = (pl.cdiv(N, tn),)

    return pl.pallas_call(
        _pool_fc_kernel,
        out_shape=jax.ShapeDtypeStruct((N, OUT_FEATURES), jnp.float32),
        grid=grid,
        in_specs=[
            pl.BlockSpec((tn, L, C), lambda i: (i, 0, 0)),
            pl.BlockSpec((C, OUT_FEATURES), lambda i: (0, 0)),
            pl.BlockSpec((1, OUT_FEATURES), lambda i: (0, 0)),
        ],
        out_specs=pl.BlockSpec((tn, OUT_FEATURES), lambda i: (i, 0)),
        compiler_params=pltpu.CompilerParams(
            dimension_semantics=("parallel",)),
    )(x_nlc, w, b)


# ----------------------------- parameter init ------------------------------ #

def init_params(key):
    """Matches PyTorch nn.Linear(128, 14) default init (uniform +/- 1/sqrt(fan_in))."""
    k_w, k_b = jax.random.split(key)
    bound = 1.0 / math.sqrt(IN_FEATURES)
    # PyTorch stores weight as (out, in); keep it pre-transposed as (in, out)
    # so the kernel does `pooled @ W` directly.
    fc_w = jax.random.uniform(
        k_w, (IN_FEATURES, OUT_FEATURES), jnp.float32, -bound, bound)
    fc_b = jax.random.uniform(
        k_b, (OUT_FEATURES,), jnp.float32, -bound, bound)
    return {"fc_w": fc_w, "fc_b": fc_b}


# ---------------------------------- main ------------------------------------ #

if __name__ == "__main__":
    root = jax.random.PRNGKey(0)
    k_params, k_input = jax.random.split(root)

    params = init_params(k_params)

    # Input in PyTorch NCL convention: (batch=2, channels=128, length=16).
    x = jax.random.normal(k_input, (2, IN_FEATURES, 16), jnp.float32)

    fwd = jax.jit(functools.partial(pool_fc_forward, params))

    # f32 path.
    out = fwd(x)
    jax.block_until_ready(out)
    assert out.shape == (2, OUT_FEATURES), out.shape
    ref = jnp.mean(x, axis=-1) @ params["fc_w"] + params["fc_b"]
    assert jnp.allclose(out, ref, atol=2e-3, rtol=1e-2), float(
        jnp.max(jnp.abs(out - ref)))

    # bf16 pass-through path (no wrapper upcast; pool/matmul accumulate in f32).
    x_bf16 = x.astype(jnp.bfloat16)
    out_bf16 = fwd(x_bf16)
    jax.block_until_ready(out_bf16)
    ref_bf16 = (jnp.mean(x_bf16.astype(jnp.float32), axis=-1)
                @ params["fc_w"] + params["fc_b"])
    assert jnp.allclose(out_bf16, ref_bf16, atol=5e-3, rtol=2e-2), float(
        jnp.max(jnp.abs(out_bf16 - ref_bf16)))

    print("KERNEL_OK")
</pallas_src>

<mosaic_0001>
module attributes {stable_mosaic.version = 11 : i64} {
  func.func @_pool_fc_kernel(%arg0: i32, %arg1: memref<2x16x128xf32, #tpu.memory_space<vmem>>, %arg2: memref<128x14xf32, #tpu.memory_space<vmem>>, %arg3: memref<1x14xf32, #tpu.memory_space<vmem>>, %arg4: memref<2x14xf32, #tpu.memory_space<vmem>>) attributes {dimension_semantics = [#tpu.dimension_semantics<parallel>], iteration_bounds = array<i64: 1>, scalar_prefetch = 0 : i64, scratch_operands = 0 : i64, tpu.core_type = #tpu.core_type<tc>, window_params = [{transform_indices = @transform_0, window_bounds = array<i64: 2, 16, 128>}, {pipeline_mode = #tpu.pipeline_mode<synchronous>, transform_indices = @transform_1, window_bounds = array<i64: 128, 14>}, {pipeline_mode = #tpu.pipeline_mode<synchronous>, transform_indices = @transform_2, window_bounds = array<i64: 1, 14>}, {transform_indices = @transform_3, window_bounds = array<i64: 2, 14>}]} {
    %c0 = arith.constant 0 : index
    %c0_0 = arith.constant 0 : index
    %c0_1 = arith.constant 0 : index
    %0 = vector.load %arg1[%c0, %c0_0, %c0_1] : memref<2x16x128xf32, #tpu.memory_space<vmem>>, vector<2x16x128xf32>
    %cst = arith.constant dense<0.000000e+00> : vector<2x128xf32>
    %1 = vector.multi_reduction <add>, %0, %cst [1] : vector<2x16x128xf32> to vector<2x128xf32>
    %c0_2 = arith.constant 0 : index
    %c0_3 = arith.constant 0 : index
    %2 = vector.load %arg2[%c0_2, %c0_3] : memref<128x14xf32, #tpu.memory_space<vmem>>, vector<128x14xf32>
    %cst_4 = arith.constant dense<0.000000e+00> : vector<2x14xf32>
    %3 = tpu.matmul %1, %2, %cst_4 {dimension_numbers = #tpu.dot_dimension_numbers<[1], [0], [0], [1], [0, 0, 1, 1], [], []>} : vector<2x128xf32>, vector<128x14xf32>, vector<2x14xf32> -> vector<2x14xf32>
    %cst_5 = arith.constant 6.250000e-02 : f32
    %4 = vector.broadcast %cst_5 : f32 to vector<2x14xf32>
    %5 = arith.mulf %3, %4 : vector<2x14xf32>
    %c0_6 = arith.constant 0 : index
    %c0_7 = arith.constant 0 : index
    %6 = vector.load %arg3[%c0_6, %c0_7] : memref<1x14xf32, #tpu.memory_space<vmem>>, vector<1x14xf32>
    %7 = vector.broadcast %6 : vector<1x14xf32> to vector<2x14xf32>
    %8 = arith.addf %5, %7 : vector<2x14xf32>
    %c0_8 = arith.constant 0 : index
    %c0_9 = arith.constant 0 : index
    %9 = vector.load %arg4[%c0_8, %c0_9] : memref<2x14xf32, #tpu.memory_space<vmem>>, vector<2x14xf32>
    tpu.vector_store %arg4[%c0_8, %c0_9], %8 {strides = array<i32>} : memref<2x14xf32, #tpu.memory_space<vmem>>, vector<2x14xf32>,
    return
  }
  func.func @transform_0(%arg0: i32) -> (i32, i32, i32) {
    %c0_i32 = arith.constant 0 : i32
    %c0_i32_0 = arith.constant 0 : i32
    %c0_i32_1 = arith.constant 0 : i32
    return %arg0, %c0_i32, %c0_i32_0 : i32, i32, i32
  }
  func.func @transform_1(%arg0: i32) -> (i32, i32) {
    %c0_i32 = arith.constant 0 : i32
    %c0_i32_0 = arith.constant 0 : i32
    %c0_i32_1 = arith.constant 0 : i32
    return %c0_i32, %c0_i32_0 : i32, i32
  }
  func.func @transform_2(%arg0: i32) -> (i32, i32) {
    %c0_i32 = arith.constant 0 : i32
    %c0_i32_0 = arith.constant 0 : i32
    %c0_i32_1 = arith.constant 0 : i32
    return %c0_i32, %c0_i32_0 : i32, i32
  }
  func.func @transform_3(%arg0: i32) -> (i32, i32) {
    %c0_i32 = arith.constant 0 : i32
    %c0_i32_0 = arith.constant 0 : i32
    return %arg0, %c0_i32 : i32, i32
  }
}

</mosaic_0001>

<llo_original>
// kernel: pool_fc_forward.1
$region0: #{pool_fc_forward.1}
  #allocation0 [shape = 'u32[]', space=smem, size = 0x4, offset = 0x4, fixed_abs, tag = 'smem constant byte address 0x4 - core index']
  #allocation1 [shape = 'u32[144,128]{1,0:T(1,128)}', space=vmem, size = 0x12000, scoped, tag = 'internal scratch']
  %s0 = inlined_call_operand.hbm [shape: f32[2,16,128], index: 0, kind: input, shape index: {}]
  %s1 = inlined_call_operand.hbm [shape: f32[128,14], index: 1, kind: input, shape index: {}]
  %s2 = inlined_call_operand.vmem [shape: f32[1,14], index: 2, kind: input, shape index: {}]
  %s3 = inlined_call_operand.hbm [shape: f32[2,14], index: 3, kind: output, shape index: {}]
  %s4 = sld [smem:[#allocation0]]
  $region30: #{pool_fc_forward.1} parent=0
    _
  %s6 = ssub.s32 1, %s4
  %s7 = scalar_select 0, %s6, %s4
  $region1: #{pool_fc_forward.1} parent=0
    #allocation2 [shape = 'u8[16384]{0}', space=vmem, size = 0x4000, scoped, tag = 'input window, operand 0, single buffered']
    #allocation3 [shape = 's32[1]{0}', space=sflag, size = 0x4, scoped, tag = 'scoped memory for pool_fc_forward.1']
    #allocation4 [shape = 's32[1]{0}', space=sflag, size = 0x4, scoped, tag = 'scoped memory for pool_fc_forward.1']
    #allocation5 [shape = 'u8[65536]{0}', space=vmem, size = 0x10000, scoped, tag = 'input window, operand 1, single buffered']
    #allocation6 [shape = 's32[1]{0}', space=sflag, size = 0x4, scoped, tag = 'scoped memory for pool_fc_forward.1']
    #allocation7 [shape = 'u8[1024]{0}', space=vmem, size = 0x400, scoped, tag = 'output window, operand 0, single buffered']
    %8 = vsyncpa [#allocation3], 0
    %9 = vsyncpa [#allocation6], 0
    %10 = vsyncpa [#allocation4], 0
    // Predicated region
    $region2: #{pool_fc_forward.1} parent=1 // pred_check
      _
    $region3: #{pool_fc_forward.1} parent=1 // pred_check_branch
      %12 = sbr.rel (0) target = $region5
    $region4: #{pool_fc_forward.1} parent=1 // pred_region
      %s14 = ssub.s32 512, 512
      %15 = vsyncadd [#allocation3], %s14
      %s16 = sshll.u32 [#allocation2], 4
      %s17 = int_to_ptr.vmem [resolvable:$true] %s16
      %22 = dma.hbm_to_vmem [thread:$0]  %s0, 512, %s17, [#allocation3], 128, 128, 8
    $region5: #{pool_fc_forward.1} parent=1 // pred_fallthru
      _
    // Predicated region
    $region6: #{pool_fc_forward.1} parent=1 // pred_check
      _
    $region7: #{pool_fc_forward.1} parent=1 // pred_check_branch
      %24 = sbr.rel (0) target = $region9
    $region8: #{pool_fc_forward.1} parent=1 // pred_region
      %s26 = ssub.s32 2048, 2048
      %27 = vsyncadd [#allocation6], %s26
      %s28 = sshll.u32 [#allocation5], 4
      %s29 = int_to_ptr.vmem [resolvable:$true] %s28
      %34 = dma.hbm_to_vmem [thread:$0]  %s1, 2048, %s29, [#allocation6], 128, 128, 8
    $region9: #{pool_fc_forward.1} parent=1 // pred_fallthru
      _
    // Predicated region
    $region10: #{pool_fc_forward.1} parent=1 // pred_check
      _
    $region11: #{pool_fc_forward.1} parent=1 // pred_check_branch
      %36 = sbr.rel (0) target = $region13
    $region12: #{pool_fc_forward.1} parent=1 // pred_region
      _
    $region13: #{pool_fc_forward.1} parent=1 // pred_fallthru
      _
    // Predicated region
    $region14: #{pool_fc_forward.1} parent=1 // pred_check
      _
    $region15: #{pool_fc_forward.1} parent=1 // pred_check_branch
      %38 = sbr.rel (0) target = $region17
    $region16: #{pool_fc_forward.1} parent=1 // pred_region
      %39 = dma.done [#allocation3], 512
    $region17: #{pool_fc_forward.1} parent=1 // pred_fallthru
      _
    // Predicated region
    $region18: #{pool_fc_forward.1} parent=1 // pred_check
      _
    $region19: #{pool_fc_forward.1} parent=1 // pred_check_branch
      %41 = sbr.rel (0) target = $region21
    $region20: #{pool_fc_forward.1} parent=1 // pred_region
      %42 = dma.done [#allocation6], 2048
    $region21: #{pool_fc_forward.1} parent=1 // pred_fallthru
      _
    %v43 = vld [vmem:[#allocation2] sm:$0xff]
    %v44 = vld [vmem:[#allocation2 + $0x8] sm:$0xff]
    %v45 = vld [vmem:[#allocation2 + $0x10] sm:$0xff]
    %v46 = vld [vmem:[#allocation2 + $0x18] sm:$0xff]
    %v47 = vadd.f32 %v43, %v44
    %v48 = vrot.slane %v47, 4
    %v49 = vadd.f32 %v47, %v48
    %v50 = vrot.slane %v49, 2
    %v51 = vadd.f32 %v49, %v50
    %v52 = vrot.slane %v51, 1
    %v53 = vadd.f32 %v51, %v52
    %v54 = vadd.f32 %v45, %v46
    %v55 = vrot.slane %v54, 4
    %v56 = vadd.f32 %v54, %v55
    %v57 = vrot.slane %v56, 2
    %v58 = vadd.f32 %v56, %v57
    %v59 = vrot.slane %v58, 1
    %v60 = vadd.f32 %v58, %v59
    %v61 = vld [vmem:[#allocation5] sm:$0xff]
    %v62 = vld [vmem:[#allocation5 + $0x8] sm:$0xff]
    %v63 = vld [vmem:[#allocation5 + $0x10] sm:$0xff]
    %v64 = vld [vmem:[#allocation5 + $0x18] sm:$0xff]
    %v65 = vld [vmem:[#allocation5 + $0x20] sm:$0xff]
    %v66 = vld [vmem:[#allocation5 + $0x28] sm:$0xff]
    %v67 = vld [vmem:[#allocation5 + $0x30] sm:$0xff]
    %v68 = vld [vmem:[#allocation5 + $0x38] sm:$0xff]
    %v69 = vld [vmem:[#allocation5 + $0x40] sm:$0xff]
    %v70 = vld [vmem:[#allocation5 + $0x48] sm:$0xff]
    %v71 = vld [vmem:[#allocation5 + $0x50] sm:$0xff]
    %v72 = vld [vmem:[#allocation5 + $0x58] sm:$0xff]
    %v73 = vld [vmem:[#allocation5 + $0x60] sm:$0xff]
    %v74 = vld [vmem:[#allocation5 + $0x68] sm:$0xff]
    %v75 = vld [vmem:[#allocation5 + $0x70] sm:$0xff]
    %v76 = vld [vmem:[#allocation5 + $0x78] sm:$0xff]
    %vm79 = vcmask 1041409
    %v80 = vsel %vm79, %v60, %v53
    %82 = vmatprep.subr.mxu0 0.0
    %83 = vmatpush1.msra.mxu0 %v61
    %84 = vmatprep.subr.mxu0 0.0
    %85 = vmatpush1.msra.mxu0 %v62
    %86 = vmatprep.subr.mxu0 0.0
    %87 = vmatpush1.msra.mxu0 %v63
    %88 = vmatprep.subr.mxu0 0.0
    %89 = vmatpush1.msra.mxu0 %v64
    %90 = vmatprep.subr.mxu0 0.0
    %91 = vmatpush1.msra.mxu0 %v65
    %92 = vmatprep.subr.mxu0 0.0
    %93 = vmatpush1.msra.mxu0 %v66
    %94 = vmatprep.subr.mxu0 0.0
    %95 = vmatpush1.msra.mxu0 %v67
    %96 = vmatprep.subr.mxu0 0.0
    %97 = vmatpush1.msra.mxu0 %v68
    %98 = vmatprep.subr.mxu0 0.0
    %99 = vmatpush1.msra.mxu0 %v69
    %100 = vmatprep.subr.mxu0 0.0
    %101 = vmatpush1.msra.mxu0 %v70
    %102 = vmatprep.subr.mxu0 0.0
    %103 = vmatpush1.msra.mxu0 %v71
    %104 = vmatprep.subr.mxu0 0.0
    %105 = vmatpush1.msra.mxu0 %v72
    %106 = vmatprep.subr.mxu0 0.0
    %107 = vmatpush1.msra.mxu0 %v73
    %108 = vmatprep.subr.mxu0 0.0
    %109 = vmatpush1.msra.mxu0 %v74
    %110 = vmatprep.subr.mxu0 0.0
    %111 = vmatpush1.msra.mxu0 %v75
    %112 = vmatprep.subr.mxu0 0.0
    %113 = vmatpush1.msra.mxu0 %v76
    %114 = vmatprep.subr.mxu0 0.0
    %115 = vmatpush1.msra.mxu0 0.0
    %116 = vmatprep.subr.mxu0 0.0
    %117 = vmatpush1.msra.mxu0 0.0
    %118 = vmatprep.subr.mxu0 0.0
    %119 = vmatpush1.msra.mxu0 0.0
    %120 = vmatprep.subr.mxu0 0.0
    %121 = vmatpush1.msra.mxu0 0.0
    %122 = vmatprep.subr.mxu0 0.0
    %123 = vmatpush1.msra.mxu0 0.0
    %124 = vmatprep.subr.mxu0 0.0
    %125 = vmatpush1.msra.mxu0 0.0
    %126 = vmatprep.subr.mxu0 0.0
    %127 = vmatpush1.msra.mxu0 0.0
    %128 = vmatprep.subr.mxu0 0.0
    %129 = vmatpush1.msra.mxu0 0.0
    %130 = vmatprep.subr.mxu0 0.0
    %131 = vmatpush1.msra.mxu0 0.0
    %132 = vmatprep.subr.mxu0 0.0
    %133 = vmatpush1.msra.mxu0 0.0
    %134 = vmatprep.subr.mxu0 0.0
    %135 = vmatpush1.msra.mxu0 0.0
    %136 = vmatprep.subr.mxu0 0.0
    %137 = vmatpush1.msra.mxu0 0.0
    %138 = vmatprep.subr.mxu0 0.0
    %139 = vmatpush1.msra.mxu0 0.0
    %140 = vmatprep.subr.mxu0 0.0
    %141 = vmatpush1.msra.mxu0 0.0
    %142 = vmatprep.subr.mxu0 0.0
    %143 = vmatpush1.msra.mxu0 0.0
    %144 = vmatprep.subr.mxu0 0.0
    %145 = vmatpush1.msra.mxu0 0.0
    %146 = vmatprep.mubr.f32.mxu0 0.0
    %147 = vmatmul.mubr.f32.gmra.mrb[0].mxu0 %v80
    %v148 = vpop.f32.mrb[0].mxu0
    %v149 = vadd.f32 0.0, %v148
    %v150 = vpop.f32.mrb[0].mxu0
    %151 = vdwg.mxu0
    %v152 = vmul.f32 %v149, 0.0625
    %v153 = vld [vmem:[%s2] sm:$0x1]
    %v155 = vlaneseq
    %v156 = vshrl.u32 %v155, 7
    %v157 = vsub.s32 0, %v156
    %v158 = vrot.slane %v153, %v157
    %v160 = vadd.f32 %v152, %v158
    %vm161 = vcmask 107520
    %162 = vst.msk [vmem:[#allocation7] sm:$0x3] %vm161, %v160
    // Predicated region
    $region22: #{pool_fc_forward.1} parent=1 // pred_check
      _
    $region23: #{pool_fc_forward.1} parent=1 // pred_check_branch
      %164 = sbr.rel (0) target = $region25
    $region24: #{pool_fc_forward.1} parent=1 // pred_region
      %s166 = ssub.s32 32, 32
      %167 = vsyncadd [#allocation4], %s166
      %s169 = sshll.u32 [#allocation7], 4
      %s170 = int_to_ptr.vmem [resolvable:$true] %s169
      %172 = dma.vmem_to_hbm [thread:$0]  %s170, 32, %s3, [#allocation4]
    $region25: #{pool_fc_forward.1} parent=1 // pred_fallthru
      _
    // Predicated region
    $region26: #{pool_fc_forward.1} parent=1 // pred_check
      _
    $region27: #{pool_fc_forward.1} parent=1 // pred_check_branch
      %174 = sbr.rel (0) target = $region29
    $region28: #{pool_fc_forward.1} parent=1 // pred_region
      %175 = dma.done [#allocation4], 32
    $region29: #{pool_fc_forward.1} parent=1 // pred_fallthru
      _
    %176 = vsyncpa [#allocation3], 1
    %177 = vsyncpa [#allocation6], 1
    %178 = vsyncpa [#allocation4], 1

</llo_original>
